<compile_context>
chip_gen: v5e
topology: v5e:2x2
jax: 0.10.0
libtpu: 0.0.40
codegen_flags: <defaults>
</compile_context>

<pallas_src>
import jax
import jax.numpy as jnp
from jax.experimental import pallas as pl
from jax.experimental.pallas import tpu as pltpu


_NEG_PAD = -1e30  # finite "-inf" used to pad the class axis (bf16/f32 safe)


def _round_up(x, m):
    return ((x + m - 1) // m) * m


def _untargeted_ce_kernel(logits_ref, classes_ref, out_ref, m_ref, l_ref, t_ref):
    """Online per-sample cross-entropy: loss_i = logsumexp_c(logits_ic) - logits_i[y_i].

    Grid = (batch_tiles, class_tiles); class axis is last ("arbitrary").
    m/l/t scratch hold the running max, running exp-sum, and running true-class
    logit for the resident batch tile.
    """
    k = pl.program_id(1)
    nk = pl.num_programs(1)

    @pl.when(k == 0)
    def _():
        m_ref[...] = jnp.full(m_ref.shape, -jnp.inf, m_ref.dtype)
        l_ref[...] = jnp.zeros(l_ref.shape, l_ref.dtype)
        t_ref[...] = jnp.zeros(t_ref.shape, t_ref.dtype)

    # single load of the (TB, TC) tile; upcast in-kernel (inputs may be bf16)
    logits = logits_ref[...].astype(jnp.float32)          # (TB, TC)
    classes = classes_ref[...]                            # (TB, 1) int32
    tb, tc = logits.shape

    # true-class logit via select-and-reduce (one VPU select, no bool->f32 cast).
    # NOTE: assumes 0 <= true_class < C (no ignore_index sentinels).
    col = jax.lax.broadcasted_iota(jnp.int32, (tb, tc), 1) + k * tc
    t_ref[...] += jnp.sum(jnp.where(col == classes, logits, 0.0),
                          axis=-1, keepdims=True)

    # online (numerically stable) logsumexp accumulation over class tiles
    m_prev = m_ref[...]
    m_new = jnp.maximum(m_prev, jnp.max(logits, axis=-1, keepdims=True))
    alpha = jnp.exp(m_prev - m_new)
    l_ref[...] = alpha * l_ref[...] + jnp.sum(jnp.exp(logits - m_new),
                                              axis=-1, keepdims=True)
    m_ref[...] = m_new

    @pl.when(k == nk - 1)
    def _():
        lse = m_ref[...] + jnp.log(l_ref[...])
        out_ref[...] = (lse - t_ref[...]).astype(out_ref.dtype)


def untargeted_objective(logits, true_classes, perturbations=None, *,
                         batch_tile=512, class_tile=2048):
    """
    JAX/Pallas equivalent of UntargetedObjective.forward:
    returns per-sample cross-entropy loss (reduction='none'), shape [B], f32.

    `perturbations` is accepted for API parity; the default classification
    loss ignores it.
    # TODO(synk): perturbation-aware loss variants (e.g. regularized losses)
    # are not implemented; plain per-sample cross-entropy is used either way.
    """
    b, c = logits.shape
    dtype = jnp.dtype(logits.dtype)
    itemsize = dtype.itemsize
    sub = 16 if itemsize == 2 else 8          # sublane packing (bf16 vs f32)

    # ---- batch tiling (sublane axis) ----
    tb = max(sub, (int(batch_tile) // sub) * sub)
    b_pad = _round_up(b, sub)
    if b_pad <= tb:
        tb = b_pad                            # single batch tile, full extent
    else:
        b_pad = _round_up(b_pad, tb)

    # ---- class tiling (lane axis): full-C block if small, else online LSE ----
    if c <= class_tile:
        tc, c_pad = c, c                      # block == full class dim
    else:
        tc = max(128, (int(class_tile) // 128) * 128)
        c_pad = _round_up(c, tc)

    # ---- padding: padded class columns -> -1e30 (never win max / add ~0);
    #      padded batch rows -> 0 (their losses are sliced off below) ----
    logits_p = logits
    if c_pad != c:
        logits_p = jnp.pad(logits_p, ((0, 0), (0, c_pad - c)),
                           constant_values=jnp.asarray(_NEG_PAD, dtype))
    classes_2d = true_classes.astype(jnp.int32).reshape(b, 1)
    if b_pad != b:
        logits_p = jnp.pad(logits_p, ((0, b_pad - b), (0, 0)))
        classes_2d = jnp.pad(classes_2d, ((0, b_pad - b), (0, 0)))

    grid = (b_pad // tb, c_pad // tc)

    # scoped-VMEM budget: double-buffered logits tile + small buffers + slack,
    # clamped so it stays comfortably inside v7x's 64 MiB physical VMEM.
    tile_bytes = tb * tc * itemsize
    vmem_limit = int(min(max(4 * tile_bytes + (2 << 20), 16 << 20), 48 << 20))

    loss = pl.pallas_call(
        _untargeted_ce_kernel,
        out_shape=jax.ShapeDtypeStruct((b_pad, 1), jnp.float32),
        grid_spec=pltpu.PrefetchScalarGridSpec(
            num_scalar_prefetch=0,
            grid=grid,
            in_specs=[
                pl.BlockSpec((tb, tc), lambda i, k: (i, k)),   # logits tile
                pl.BlockSpec((tb, 1), lambda i, k: (i, 0)),    # classes column
            ],
            out_specs=pl.BlockSpec((tb, 1), lambda i, k: (i, 0)),
            scratch_shapes=[
                pltpu.VMEM((tb, 1), jnp.float32),   # running max  m
                pltpu.VMEM((tb, 1), jnp.float32),   # running sum  l
                pltpu.VMEM((tb, 1), jnp.float32),   # running true logit
            ],
        ),
        compiler_params=pltpu.CompilerParams(
            dimension_semantics=("parallel", "arbitrary"),
            vmem_limit_bytes=vmem_limit,
        ),
    )(logits_p, classes_2d)
    return loss[:b, 0]


def _reference(logits, true_classes):
    logits = logits.astype(jnp.float32)
    lse = jax.nn.logsumexp(logits, axis=-1)
    true_logit = jnp.take_along_axis(
        logits, true_classes.reshape(-1, 1).astype(jnp.int32), axis=1
    )[:, 0]
    return lse - true_logit


if __name__ == "__main__":
    key = jax.random.PRNGKey(0)
    k1, k2, k3, k4 = jax.random.split(key, 4)

    # case 1: tiny single-tile f32 (B=8, C=32) — grid (1, 1)
    B, C = 8, 32
    logits = jax.random.normal(k1, (B, C), dtype=jnp.float32)
    true_classes = jax.random.randint(k2, (B,), 0, C, dtype=jnp.int32)
    out = jax.block_until_ready(untargeted_objective(logits, true_classes))
    ref = _reference(logits, true_classes)
    assert out.shape == (B,)
    assert jnp.allclose(out, ref, atol=1e-5, rtol=1e-5), (out, ref)

    # case 2: bf16 input, non-divisible shapes — exercises batch grid, online
    # class-tiled LSE, and padding (B=40 -> 48 rows, C=300 -> 384 cols).
    B2, C2 = 40, 300
    logits2 = jax.random.normal(k3, (B2, C2), dtype=jnp.bfloat16)
    true_classes2 = jax.random.randint(k4, (B2,), 0, C2, dtype=jnp.int32)
    out2 = jax.block_until_ready(
        untargeted_objective(logits2, true_classes2, batch_tile=16, class_tile=128)
    )
    ref2 = _reference(logits2, true_classes2)
    assert out2.shape == (B2,)
    assert jnp.allclose(out2, ref2, atol=1e-3, rtol=1e-3), (out2, ref2)

    print("KERNEL_OK")
</pallas_src>

<mosaic_0001>
module attributes {stable_mosaic.version = 11 : i64} {
  func.func @_untargeted_ce_kernel(%arg0: i32, %arg1: i32, %arg2: memref<8x32xf32, #tpu.memory_space<vmem>>, %arg3: memref<8x1xi32, #tpu.memory_space<vmem>>, %arg4: memref<8x1xf32, #tpu.memory_space<vmem>>, %arg5: memref<8x1xf32, #tpu.memory_space<vmem>>, %arg6: memref<8x1xf32, #tpu.memory_space<vmem>>, %arg7: memref<8x1xf32, #tpu.memory_space<vmem>>) attributes {dimension_semantics = [#tpu.dimension_semantics<parallel>, #tpu.dimension_semantics<arbitrary>], iteration_bounds = array<i64: 1, 1>, scalar_prefetch = 0 : i64, scratch_operands = 3 : i64, tpu.core_type = #tpu.core_type<tc>, window_params = [{transform_indices = @transform_0, window_bounds = array<i64: 8, 32>}, {transform_indices = @transform_1, window_bounds = array<i64: 8, 1>}, {transform_indices = @transform_2, window_bounds = array<i64: 8, 1>}]} {
    %c0_i32 = arith.constant 0 : i32
    %0 = arith.cmpi eq, %arg1, %c0_i32 : i32
    %1 = arith.extui %0 : i1 to i32
    %c0_i32_0 = arith.constant 0 : i32
    %2 = arith.cmpi ne, %1, %c0_i32_0 : i32
    scf.if %2 {
      %cst_21 = arith.constant 0xFF800000 : f32
      %37 = vector.broadcast %cst_21 : f32 to vector<8x1xf32>
      %c0_22 = arith.constant 0 : index
      %c0_23 = arith.constant 0 : index
      %38 = vector.load %arg5[%c0_22, %c0_23] : memref<8x1xf32, #tpu.memory_space<vmem>>, vector<8x1xf32>
      tpu.vector_store %arg5[%c0_22, %c0_23], %37 {strides = array<i32>} : memref<8x1xf32, #tpu.memory_space<vmem>>, vector<8x1xf32>,
      %cst_24 = arith.constant 0.000000e+00 : f32
      %39 = vector.broadcast %cst_24 : f32 to vector<8x1xf32>
      %c0_25 = arith.constant 0 : index
      %c0_26 = arith.constant 0 : index
      %40 = vector.load %arg6[%c0_25, %c0_26] : memref<8x1xf32, #tpu.memory_space<vmem>>, vector<8x1xf32>
      tpu.vector_store %arg6[%c0_25, %c0_26], %39 {strides = array<i32>} : memref<8x1xf32, #tpu.memory_space<vmem>>, vector<8x1xf32>,
      %cst_27 = arith.constant 0.000000e+00 : f32
      %41 = vector.broadcast %cst_27 : f32 to vector<8x1xf32>
      %c0_28 = arith.constant 0 : index
      %c0_29 = arith.constant 0 : index
      %42 = vector.load %arg7[%c0_28, %c0_29] : memref<8x1xf32, #tpu.memory_space<vmem>>, vector<8x1xf32>
      tpu.vector_store %arg7[%c0_28, %c0_29], %41 {strides = array<i32>} : memref<8x1xf32, #tpu.memory_space<vmem>>, vector<8x1xf32>,
    } else {
    }
    %c0 = arith.constant 0 : index
    %c0_1 = arith.constant 0 : index
    %3 = vector.load %arg2[%c0, %c0_1] : memref<8x32xf32, #tpu.memory_space<vmem>>, vector<8x32xf32>
    %c0_2 = arith.constant 0 : index
    %c0_3 = arith.constant 0 : index
    %4 = vector.load %arg3[%c0_2, %c0_3] : memref<8x1xi32, #tpu.memory_space<vmem>>, vector<8x1xi32>
    %5 = tpu.iota {dimensions = array<i32: 1>} : vector<8x32xi32>
    %c32_i32 = arith.constant 32 : i32
    %6 = arith.muli %arg1, %c32_i32 : i32
    %7 = vector.broadcast %6 : i32 to vector<8x32xi32>
    %8 = arith.addi %5, %7 : vector<8x32xi32>
    %c0_4 = arith.constant 0 : index
    %c0_5 = arith.constant 0 : index
    %9 = vector.load %arg7[%c0_4, %c0_5] : memref<8x1xf32, #tpu.memory_space<vmem>>, vector<8x1xf32>
    %10 = vector.broadcast %4 : vector<8x1xi32> to vector<8x32xi32>
    %11 = arith.cmpi eq, %8, %10 : vector<8x32xi32>
    %cst = arith.constant 0.000000e+00 : f32
    %12 = vector.broadcast %cst : f32 to vector<8x32xf32>
    %13 = arith.select %11, %3, %12 : vector<8x32xi1>, vector<8x32xf32>
    %cst_6 = arith.constant dense<0.000000e+00> : vector<8xf32>
    %14 = vector.multi_reduction <add>, %13, %cst_6 [1] : vector<8x32xf32> to vector<8xf32>
    %15 = vector.shape_cast %14 : vector<8xf32> to vector<8x1xf32>
    %16 = arith.addf %9, %15 : vector<8x1xf32>
    %c0_7 = arith.constant 0 : index
    %c0_8 = arith.constant 0 : index
    %17 = vector.load %arg7[%c0_7, %c0_8] : memref<8x1xf32, #tpu.memory_space<vmem>>, vector<8x1xf32>
    tpu.vector_store %arg7[%c0_7, %c0_8], %16 {strides = array<i32>} : memref<8x1xf32, #tpu.memory_space<vmem>>, vector<8x1xf32>,
    %c0_9 = arith.constant 0 : index
    %c0_10 = arith.constant 0 : index
    %18 = vector.load %arg5[%c0_9, %c0_10] : memref<8x1xf32, #tpu.memory_space<vmem>>, vector<8x1xf32>
    %cst_11 = arith.constant dense<0xFF800000> : vector<8xf32>
    %19 = vector.multi_reduction <maximumf>, %3, %cst_11 [1] : vector<8x32xf32> to vector<8xf32>
    %20 = vector.shape_cast %19 : vector<8xf32> to vector<8x1xf32>
    %21 = arith.maximumf %18, %20 : vector<8x1xf32>
    %22 = arith.subf %18, %21 : vector<8x1xf32>
    %23 = math.exp %22 : vector<8x1xf32>
    %c0_12 = arith.constant 0 : index
    %c0_13 = arith.constant 0 : index
    %24 = vector.load %arg6[%c0_12, %c0_13] : memref<8x1xf32, #tpu.memory_space<vmem>>, vector<8x1xf32>
    %25 = arith.mulf %23, %24 : vector<8x1xf32>
    %26 = vector.broadcast %21 : vector<8x1xf32> to vector<8x32xf32>
    %27 = arith.subf %3, %26 : vector<8x32xf32>
    %28 = math.exp %27 : vector<8x32xf32>
    %cst_14 = arith.constant dense<0.000000e+00> : vector<8xf32>
    %29 = vector.multi_reduction <add>, %28, %cst_14 [1] : vector<8x32xf32> to vector<8xf32>
    %30 = vector.shape_cast %29 : vector<8xf32> to vector<8x1xf32>
    %31 = arith.addf %25, %30 : vector<8x1xf32>
    %c0_15 = arith.constant 0 : index
    %c0_16 = arith.constant 0 : index
    %32 = vector.load %arg6[%c0_15, %c0_16] : memref<8x1xf32, #tpu.memory_space<vmem>>, vector<8x1xf32>
    tpu.vector_store %arg6[%c0_15, %c0_16], %31 {strides = array<i32>} : memref<8x1xf32, #tpu.memory_space<vmem>>, vector<8x1xf32>,
    %c0_17 = arith.constant 0 : index
    %c0_18 = arith.constant 0 : index
    %33 = vector.load %arg5[%c0_17, %c0_18] : memref<8x1xf32, #tpu.memory_space<vmem>>, vector<8x1xf32>
    tpu.vector_store %arg5[%c0_17, %c0_18], %21 {strides = array<i32>} : memref<8x1xf32, #tpu.memory_space<vmem>>, vector<8x1xf32>,
    %c0_i32_19 = arith.constant 0 : i32
    %34 = arith.cmpi eq, %arg1, %c0_i32_19 : i32
    %35 = arith.extui %34 : i1 to i32
    %c0_i32_20 = arith.constant 0 : i32
    %36 = arith.cmpi ne, %35, %c0_i32_20 : i32
    scf.if %36 {
      %c0_21 = arith.constant 0 : index
      %c0_22 = arith.constant 0 : index
      %37 = vector.load %arg5[%c0_21, %c0_22] : memref<8x1xf32, #tpu.memory_space<vmem>>, vector<8x1xf32>
      %c0_23 = arith.constant 0 : index
      %c0_24 = arith.constant 0 : index
      %38 = vector.load %arg6[%c0_23, %c0_24] : memref<8x1xf32, #tpu.memory_space<vmem>>, vector<8x1xf32>
      %39 = math.log %38 : vector<8x1xf32>
      %40 = arith.addf %37, %39 : vector<8x1xf32>
      %c0_25 = arith.constant 0 : index
      %c0_26 = arith.constant 0 : index
      %41 = vector.load %arg7[%c0_25, %c0_26] : memref<8x1xf32, #tpu.memory_space<vmem>>, vector<8x1xf32>
      %42 = arith.subf %40, %41 : vector<8x1xf32>
      %c0_27 = arith.constant 0 : index
      %c0_28 = arith.constant 0 : index
      %43 = vector.load %arg4[%c0_27, %c0_28] : memref<8x1xf32, #tpu.memory_space<vmem>>, vector<8x1xf32>
      tpu.vector_store %arg4[%c0_27, %c0_28], %42 {strides = array<i32>} : memref<8x1xf32, #tpu.memory_space<vmem>>, vector<8x1xf32>,
    } else {
    }
    return
  }
  func.func @transform_0(%arg0: i32, %arg1: i32) -> (i32, i32) {
    %c0_i32 = arith.constant 0 : i32
    return %arg0, %arg1 : i32, i32
  }
  func.func @transform_1(%arg0: i32, %arg1: i32) -> (i32, i32) {
    %c0_i32 = arith.constant 0 : i32
    %c0_i32_0 = arith.constant 0 : i32
    return %arg0, %c0_i32 : i32, i32
  }
  func.func @transform_2(%arg0: i32, %arg1: i32) -> (i32, i32) {
    %c0_i32 = arith.constant 0 : i32
    %c0_i32_0 = arith.constant 0 : i32
    return %arg0, %c0_i32 : i32, i32
  }
}

</mosaic_0001>

<llo_original>
// kernel: tpu_custom_call.1
$region0: #{tpu_custom_call.1}
  #allocation0 [shape = 'u32[]', space=smem, size = 0x4, offset = 0x4, fixed_abs, tag = 'smem constant byte address 0x4 - core index']
  #allocation1 [shape = 'u32[72,128]{1,0:T(1,128)}', space=vmem, size = 0x9000, scoped, tag = 'internal scratch']
  #allocation2 [shape = 'f32[8,1]{1,0:T(8,128)}', space=vmem, size = 0x1000, scoped, tag = 'scratch operand']
  #allocation3 [shape = 'f32[8,1]{1,0:T(8,128)}', space=vmem, size = 0x1000, scoped, tag = 'scratch operand']
  #allocation4 [shape = 'f32[8,1]{1,0:T(8,128)}', space=vmem, size = 0x1000, scoped, tag = 'scratch operand']
  %s0 = inlined_call_operand.vmem [shape: f32[8,32], index: 0, kind: input, shape index: {}]
  %s1 = inlined_call_operand.vmem [shape: s32[8,1], index: 1, kind: input, shape index: {}]
  %s2 = inlined_call_operand.vmem [shape: f32[8,1], index: 2, kind: output, shape index: {}]
  %s3 = sld [smem:[#allocation0]]
  $region26: #{tpu_custom_call.1} parent=0
    _
  %s5 = ssub.s32 1, %s3
  %s6 = scalar_select 0, %s5, %s3
  // Predicated region
  $region2: #{tpu_custom_call.1} parent=0 // pred_check
    _
  $region3: #{tpu_custom_call.1} parent=0 // pred_check_branch
    %8 = sbr.rel (0) target = $region5
  $region4: #{tpu_custom_call.1} parent=0 // pred_region
    _
  $region5: #{tpu_custom_call.1} parent=0 // pred_fallthru
    _
  // Predicated region
  $region6: #{tpu_custom_call.1} parent=0 // pred_check
    _
  $region7: #{tpu_custom_call.1} parent=0 // pred_check_branch
    %10 = sbr.rel (0) target = $region9
  $region8: #{tpu_custom_call.1} parent=0 // pred_region
    _
  $region9: #{tpu_custom_call.1} parent=0 // pred_fallthru
    _
  %p11 = scmp.eq.s32.totalorder 0, 0
  // Predicated region
  $region10: #{tpu_custom_call.1} parent=0 // pred_check
    %p12 = pneg %p11
  $region11: #{tpu_custom_call.1} parent=0 // pred_check_branch
    %14 = sbr.rel (%p12) target = $region13
  $region12: #{tpu_custom_call.1} parent=0 // pred_region
    %vm15 = vcmask 7168
    %16 = vst.msk [vmem:[#allocation2] sm:$0xff] %vm15, -inf
    %17 = vst.msk [vmem:[#allocation3] sm:$0xff] %vm15, 0.0
    %18 = vst.msk [vmem:[#allocation4] sm:$0xff] %vm15, 0.0
  $region13: #{tpu_custom_call.1} parent=0 // pred_fallthru
    _
  %v19 = vld [vmem:[%s0] sm:$0xff]
  %v20 = vld [vmem:[%s1] sm:$0xff]
  %v21 = vlaneseq
  %v22 = vand.u32 %v21, 127
  %s23 = smul.u32 0, 32
  %v24 = vstv %s23
  %v25 = vadd.s32 %v22, %v24
  %v26 = vld [vmem:[#allocation4] sm:$0xff]
  %27 = vset.pattern.permute.xlu0 0
  %28 = vperm.xlu0 %27, %v20
  %v29 = vpop.permute.xlu0 %28
  %vm30 = vcmp.eq.s32.totalorder %v25, %v29
  %v31 = vsel %vm30, %v19, 0.0
  %vm32 = vcmask 261120
  %v33 = vsel %vm32, %v31, 0.0
  %34 = vadd.xlane.f32.xlu0 %v33
  %v35 = vpop.xlane.xlu0 %34
  %v36 = vadd.f32 %v26, %v35
  %vm37 = vcmask 7168
  %38 = vst.msk [vmem:[#allocation4] sm:$0xff] %vm37, %v36
  %v39 = vld [vmem:[#allocation2] sm:$0xff]
  %v40 = vsel %vm32, %v19, -inf
  %41 = vmax.xlane.f32.xlu0 %v40
  %v42 = vpop.xlane.xlu0 %41
  %v43 = vmax.f32 %v39, %v42
  %v44 = vsub.f32 %v39, %v43
  %v45 = vmul.f32 %v44, 1.442695
  %v46 = vpow.pop %v45
  %v47 = vld [vmem:[#allocation3] sm:$0xff]
  %v48 = vmul.f32 %v46, %v47
  %50 = vset.pattern.permute.xlu0 0
  %51 = vperm.xlu0 %50, %v43
  %v52 = vpop.permute.xlu0 %51
  %v54 = vsub.f32 %v19, %v52
  %v55 = vmul.f32 %v54, 1.442695
  %v56 = vpow.pop %v55
  %v57 = vsel %vm32, %v56, 0.0
  %58 = vadd.xlane.f32.xlu0 %v57
  %v59 = vpop.xlane.xlu0 %58
  %v60 = vadd.f32 %v48, %v59
  %61 = vst.msk [vmem:[#allocation3] sm:$0xff] %vm37, %v60
  %62 = vst.msk [vmem:[#allocation2] sm:$0xff] %vm37, %v43
  // Predicated region
  $region14: #{tpu_custom_call.1} parent=0 // pred_check
    %p63 = pneg %p11
  $region15: #{tpu_custom_call.1} parent=0 // pred_check_branch
    %65 = sbr.rel (%p63) target = $region17
  $region16: #{tpu_custom_call.1} parent=0 // pred_region
    %v66 = vld [vmem:[#allocation2] sm:$0xff]
    %v67 = vld [vmem:[#allocation3] sm:$0xff]
    %v68 = vlog2.pop %v67
    %v69 = vmul.f32 %v68, 0.6931472
    %v70 = vadd.f32 %v66, %v69
    %v71 = vld [vmem:[#allocation4] sm:$0xff]
    %v72 = vsub.f32 %v70, %v71
    %73 = vst.msk [vmem:[%s2] sm:$0xff] %vm37, %v72
  $region17: #{tpu_custom_call.1} parent=0 // pred_fallthru
    _
  // Predicated region
  $region18: #{tpu_custom_call.1} parent=0 // pred_check
    _
  $region19: #{tpu_custom_call.1} parent=0 // pred_check_branch
    %75 = sbr.rel (0) target = $region21
  $region20: #{tpu_custom_call.1} parent=0 // pred_region
    _
  $region21: #{tpu_custom_call.1} parent=0 // pred_fallthru
    _
  // Predicated region
  $region22: #{tpu_custom_call.1} parent=0 // pred_check
    _
  $region23: #{tpu_custom_call.1} parent=0 // pred_check_branch
    %77 = sbr.rel (0) target = $region25
  $region24: #{tpu_custom_call.1} parent=0 // pred_region
    _
  $region25: #{tpu_custom_call.1} parent=0 // pred_fallthru
    _

</llo_original>
